<compile_context>
chip_gen: v7x
topology: tpu7x:2x2x1
jax: 0.10.0
libtpu: 0.0.40
codegen_flags: <defaults>
</compile_context>

<pallas_src>
import functools

import jax
import jax.numpy as jnp
from jax.experimental import pallas as pl
from jax.experimental.pallas import tpu as pltpu

_LANE = 128
_NEG_INF = -1e30


def _round_up(x, m):
    return (x + m - 1) // m * m


def _feature_classifier_kernel(x_ref, w_ref, b_ref, logits_ref, probs_ref, *,
                               class_num):
    """Fused Linear + Softmax on one batch tile.

    x_ref      : [TB, F]   input features (VMEM, batch-tiled)
    w_ref      : [F, CP]   pre-transposed weight, class axis zero-padded to CP
                           (VMEM-resident across batch tiles)
    b_ref      : [1, CP]   bias; padded columns hold -1e30 (VMEM-resident)
    logits_ref : [TB, C]   raw linear outputs (unpadded)
    probs_ref  : [TB, C]   softmax over the C class columns (unpadded)
    """
    x = x_ref[...]
    w = w_ref[...]
    b = b_ref[...]

    # Linear: [TB, F] x [F, CP] -> [TB, CP], f32 accumulation on the MXU.
    logits = jax.lax.dot_general(
        x, w,
        dimension_numbers=(((1,), (0,)), ((), ())),
        preferred_element_type=jnp.float32,
    ) + b

    # Store only the valid class columns (unpadded output -> less HBM traffic).
    logits_ref[...] = logits[:, :class_num].astype(logits_ref.dtype)

    # Numerically-stable softmax. Padded columns carry ~-1e30 (from the bias),
    # so exp underflows to exactly 0 there; no explicit mask needed.
    m = jnp.max(logits, axis=-1, keepdims=True)
    e = jnp.exp(logits - m)
    denom = jnp.sum(e, axis=-1, keepdims=True)
    probs = e / denom
    probs_ref[...] = probs[:, :class_num].astype(probs_ref.dtype)


def _choose_batch_tile(B, use_bf16):
    """Pick a batch tile: multiple of the sublane packing, <= 2048, and
    aiming for >= 2 grid steps so v7x's two TensorCores both get work."""
    align = 16 if use_bf16 else 8
    if B <= align:
        return B                       # block equals full array dim -> legal
    half = _round_up(pl.cdiv(B, 2), align)
    return min(2048, half)


@functools.partial(jax.jit, static_argnames=("use_bf16_matmul",))
def feature_classifier(x, weight, bias, use_bf16_matmul=False):
    """x: [B, F], weight: [C, F], bias: [C] -> (logits [B, C], probs [B, C])."""
    B, F = x.shape
    C = weight.shape[0]
    CP = _round_up(C, _LANE)            # lane-dense class axis for the matmul

    # One-time (tiny) wrapper-side prep:
    #   weight pre-transposed to [F, CP], padded class columns are zero;
    #   bias padded with -1e30 so padded logits vanish in exp().
    w_t = jnp.zeros((F, CP), weight.dtype).at[:, :C].set(weight.T)
    b_p = jnp.full((1, CP), _NEG_INF, jnp.float32).at[0, :C].set(
        bias.astype(jnp.float32))

    if use_bf16_matmul:
        # Cast in the wrapper so the x DMA actually shrinks (kernel is HBM-bound).
        x = x.astype(jnp.bfloat16)
        w_t = w_t.astype(jnp.bfloat16)

    TB = _choose_batch_tile(B, use_bf16_matmul)
    grid = (pl.cdiv(B, TB),)

    kernel = functools.partial(_feature_classifier_kernel, class_num=C)

    cost = pl.CostEstimate(
        flops=2 * B * F * CP + 4 * B * CP,
        transcendentals=B * CP,
        bytes_accessed=(x.size * x.dtype.itemsize
                        + w_t.size * w_t.dtype.itemsize
                        + b_p.size * b_p.dtype.itemsize
                        + 2 * B * C * 4),
    )

    logits, probs = pl.pallas_call(
        kernel,
        out_shape=(
            jax.ShapeDtypeStruct((B, C), jnp.float32),
            jax.ShapeDtypeStruct((B, C), jnp.float32),
        ),
        grid=grid,
        in_specs=[
            pl.BlockSpec((TB, F), lambda i: (i, 0)),   # batch-tiled activations
            pl.BlockSpec((F, CP), lambda i: (0, 0)),   # VMEM-resident weight
            pl.BlockSpec((1, CP), lambda i: (0, 0)),   # VMEM-resident bias
        ],
        out_specs=(
            pl.BlockSpec((TB, C), lambda i: (i, 0)),   # unpadded logits
            pl.BlockSpec((TB, C), lambda i: (i, 0)),   # unpadded probs
        ),
        compiler_params=pltpu.CompilerParams(
            dimension_semantics=("parallel",),   # batch axis -> both v7x TCs
        ),
        cost_estimate=cost,
    )(x, w_t, b_p)

    return logits, probs


if __name__ == "__main__":
    FEATURE_DIM = 256
    CLASS_NUM = 31

    key = jax.random.PRNGKey(0)
    kx, kw, kx2 = jax.random.split(key, 3)

    # Deterministic parameter init mirroring the PyTorch __init__:
    #   weight ~ Normal(0, 0.01), bias = 0.
    weight = 0.01 * jax.random.normal(kw, (CLASS_NUM, FEATURE_DIM), dtype=jnp.float32)
    bias = jnp.zeros((CLASS_NUM,), dtype=jnp.float32)

    # ---- Small batch (single grid step) ----
    B = 8
    x = jax.random.normal(kx, (B, FEATURE_DIM), dtype=jnp.float32)

    logits, probs = feature_classifier(x, weight, bias)
    jax.block_until_ready((logits, probs))

    ref_logits = x @ weight.T + bias
    ref_probs = jax.nn.softmax(ref_logits, axis=-1)
    assert logits.shape == (B, CLASS_NUM) and probs.shape == (B, CLASS_NUM)
    assert jnp.allclose(logits, ref_logits, atol=1e-4, rtol=1e-4)
    assert jnp.allclose(probs, ref_probs, atol=1e-5, rtol=1e-5)
    assert jnp.allclose(jnp.sum(probs, axis=-1), 1.0, atol=1e-5)

    # ---- Multi-tile batch with a partial last tile (exercises grid=(2,)) ----
    B2 = 24   # TB = 16 -> grid 2, last tile has 8 valid rows
    x2 = jax.random.normal(kx2, (B2, FEATURE_DIM), dtype=jnp.float32)
    logits2, probs2 = feature_classifier(x2, weight, bias)
    jax.block_until_ready((logits2, probs2))
    ref_logits2 = x2 @ weight.T + bias
    ref_probs2 = jax.nn.softmax(ref_logits2, axis=-1)
    assert jnp.allclose(logits2, ref_logits2, atol=1e-4, rtol=1e-4)
    assert jnp.allclose(probs2, ref_probs2, atol=1e-5, rtol=1e-5)

    # ---- bf16 MXU fast path (wrapper-side casts), loose tolerance ----
    logits_bf16, probs_bf16 = feature_classifier(
        x, weight, bias, use_bf16_matmul=True)
    jax.block_until_ready((logits_bf16, probs_bf16))
    assert jnp.allclose(logits_bf16, ref_logits, atol=2e-2, rtol=2e-2)
    assert jnp.allclose(probs_bf16, ref_probs, atol=2e-2, rtol=2e-2)

    print("KERNEL_OK")
</pallas_src>

<mosaic_0001>
module attributes {stable_mosaic.version = 11 : i64} {
  func.func @_feature_classifier_kernel(%arg0: i32, %arg1: memref<8x256xf32, #tpu.memory_space<vmem>>, %arg2: memref<256x128xf32, #tpu.memory_space<vmem>>, %arg3: memref<1x128xf32, #tpu.memory_space<vmem>>, %arg4: memref<8x31xf32, #tpu.memory_space<vmem>>, %arg5: memref<8x31xf32, #tpu.memory_space<vmem>>) attributes {dimension_semantics = [#tpu.dimension_semantics<parallel>], iteration_bounds = array<i64: 1>, scalar_prefetch = 0 : i64, scratch_operands = 0 : i64, tpu.core_type = #tpu.core_type<tc>, window_params = [{transform_indices = @transform_0, window_bounds = array<i64: 8, 256>}, {pipeline_mode = #tpu.pipeline_mode<synchronous>, transform_indices = @transform_1, window_bounds = array<i64: 256, 128>}, {pipeline_mode = #tpu.pipeline_mode<synchronous>, transform_indices = @transform_2, window_bounds = array<i64: 1, 128>}, {transform_indices = @transform_3, window_bounds = array<i64: 8, 31>}, {transform_indices = @transform_4, window_bounds = array<i64: 8, 31>}]} {
    %c0 = arith.constant 0 : index
    %c0_0 = arith.constant 0 : index
    %0 = vector.load %arg1[%c0, %c0_0] : memref<8x256xf32, #tpu.memory_space<vmem>>, vector<8x256xf32>
    %c0_1 = arith.constant 0 : index
    %c0_2 = arith.constant 0 : index
    %1 = vector.load %arg2[%c0_1, %c0_2] : memref<256x128xf32, #tpu.memory_space<vmem>>, vector<256x128xf32>
    %c0_3 = arith.constant 0 : index
    %c0_4 = arith.constant 0 : index
    %2 = vector.load %arg3[%c0_3, %c0_4] : memref<1x128xf32, #tpu.memory_space<vmem>>, vector<1x128xf32>
    %cst = arith.constant dense<0.000000e+00> : vector<8x128xf32>
    %3 = tpu.matmul %0, %1, %cst {dimension_numbers = #tpu.dot_dimension_numbers<[1], [0], [0], [1], [0, 0, 1, 1], [], []>} : vector<8x256xf32>, vector<256x128xf32>, vector<8x128xf32> -> vector<8x128xf32>
    %4 = vector.broadcast %2 : vector<1x128xf32> to vector<8x128xf32>
    %5 = arith.addf %3, %4 : vector<8x128xf32>
    %6 = vector.extract_strided_slice %5 {offsets = [0, 0], sizes = [8, 31], strides = [1, 1]} : vector<8x128xf32> to vector<8x31xf32>
    %c0_5 = arith.constant 0 : index
    %c0_6 = arith.constant 0 : index
    %7 = vector.load %arg4[%c0_5, %c0_6] : memref<8x31xf32, #tpu.memory_space<vmem>>, vector<8x31xf32>
    tpu.vector_store %arg4[%c0_5, %c0_6], %6 {strides = array<i32>} : memref<8x31xf32, #tpu.memory_space<vmem>>, vector<8x31xf32>,
    %cst_7 = arith.constant dense<0xFF800000> : vector<8xf32>
    %8 = vector.multi_reduction <maximumf>, %5, %cst_7 [1] : vector<8x128xf32> to vector<8xf32>
    %9 = vector.shape_cast %8 : vector<8xf32> to vector<8x1xf32>
    %10 = vector.broadcast %9 : vector<8x1xf32> to vector<8x128xf32>
    %11 = arith.subf %5, %10 : vector<8x128xf32>
    %12 = math.exp %11 : vector<8x128xf32>
    %cst_8 = arith.constant dense<0.000000e+00> : vector<8xf32>
    %13 = vector.multi_reduction <add>, %12, %cst_8 [1] : vector<8x128xf32> to vector<8xf32>
    %14 = vector.shape_cast %13 : vector<8xf32> to vector<8x1xf32>
    %15 = vector.broadcast %14 : vector<8x1xf32> to vector<8x128xf32>
    %16 = arith.divf %12, %15 : vector<8x128xf32>
    %17 = vector.extract_strided_slice %16 {offsets = [0, 0], sizes = [8, 31], strides = [1, 1]} : vector<8x128xf32> to vector<8x31xf32>
    %c0_9 = arith.constant 0 : index
    %c0_10 = arith.constant 0 : index
    %18 = vector.load %arg5[%c0_9, %c0_10] : memref<8x31xf32, #tpu.memory_space<vmem>>, vector<8x31xf32>
    tpu.vector_store %arg5[%c0_9, %c0_10], %17 {strides = array<i32>} : memref<8x31xf32, #tpu.memory_space<vmem>>, vector<8x31xf32>,
    return
  }
  func.func @transform_0(%arg0: i32) -> (i32, i32) {
    %c0_i32 = arith.constant 0 : i32
    %c0_i32_0 = arith.constant 0 : i32
    return %arg0, %c0_i32 : i32, i32
  }
  func.func @transform_1(%arg0: i32) -> (i32, i32) {
    %c0_i32 = arith.constant 0 : i32
    %c0_i32_0 = arith.constant 0 : i32
    %c0_i32_1 = arith.constant 0 : i32
    return %c0_i32, %c0_i32_0 : i32, i32
  }
  func.func @transform_2(%arg0: i32) -> (i32, i32) {
    %c0_i32 = arith.constant 0 : i32
    %c0_i32_0 = arith.constant 0 : i32
    %c0_i32_1 = arith.constant 0 : i32
    return %c0_i32, %c0_i32_0 : i32, i32
  }
  func.func @transform_3(%arg0: i32) -> (i32, i32) {
    %c0_i32 = arith.constant 0 : i32
    %c0_i32_0 = arith.constant 0 : i32
    return %arg0, %c0_i32 : i32, i32
  }
  func.func @transform_4(%arg0: i32) -> (i32, i32) {
    %c0_i32 = arith.constant 0 : i32
    %c0_i32_0 = arith.constant 0 : i32
    return %arg0, %c0_i32 : i32, i32
  }
}

</mosaic_0001>

<llo_original>
// kernel: feature_classifier.1
$region0: #{feature_classifier.1}
  #allocation0 [shape = 'u32[]', space=smem, size = 0x4, offset = 0x4, fixed_abs, tag = 'smem constant byte address 0x4 - core index']
  #allocation1 [shape = 'u32[144,128]{1,0:T(1,128)}', space=vmem, size = 0x12000, scoped, tag = 'internal scratch']
  %s0 = inlined_call_operand.vmem [shape: f32[8,256], index: 0, kind: input, shape index: {}]
  %s1 = inlined_call_operand.vmem [shape: f32[256,128], index: 1, kind: input, shape index: {}]
  %s2 = inlined_call_operand.vmem [shape: f32[1,128], index: 2, kind: input, shape index: {}]
  %s3 = inlined_call_operand.hbm [shape: f32[8,31], index: 3, kind: output, shape index: {0}]
  %s4 = inlined_call_operand.hbm [shape: f32[8,31], index: 4, kind: output, shape index: {1}]
  %5 = xla_tuple %s3, %s4
  %s6 = sld [smem:[#allocation0]]
  $region30: #{feature_classifier.1} parent=0
    _
  %s8 = ssub.s32 1, %s6
  %s9 = scalar_select 0, %s8, %s6
  $region1: #{feature_classifier.1} parent=0
    #allocation2 [shape = 'u8[4096]{0}', space=vmem, size = 0x1000, scoped, tag = 'output window, operand 0, single buffered']
    #allocation3 [shape = 's32[1]{0}', space=sflag, size = 0x4, scoped, tag = 'scoped memory for feature_classifier.1']
    #allocation4 [shape = 'u8[4096]{0}', space=vmem, size = 0x1000, scoped, tag = 'output window, operand 1, single buffered']
    #allocation5 [shape = 's32[1]{0}', space=sflag, size = 0x4, scoped, tag = 'scoped memory for feature_classifier.1']
    %10 = vsyncpa [#allocation3], 0
    %11 = vsyncpa [#allocation5], 0
    // Predicated region
    $region2: #{feature_classifier.1} parent=1 // pred_check
      _
    $region3: #{feature_classifier.1} parent=1 // pred_check_branch
      %13 = sbr.rel (0) target = $region5
    $region4: #{feature_classifier.1} parent=1 // pred_region
      _
    $region5: #{feature_classifier.1} parent=1 // pred_fallthru
      _
    // Predicated region
    $region6: #{feature_classifier.1} parent=1 // pred_check
      _
    $region7: #{feature_classifier.1} parent=1 // pred_check_branch
      %15 = sbr.rel (0) target = $region9
    $region8: #{feature_classifier.1} parent=1 // pred_region
      _
    $region9: #{feature_classifier.1} parent=1 // pred_fallthru
      _
    // Predicated region
    $region10: #{feature_classifier.1} parent=1 // pred_check
      _
    $region11: #{feature_classifier.1} parent=1 // pred_check_branch
      %17 = sbr.rel (0) target = $region13
    $region12: #{feature_classifier.1} parent=1 // pred_region
      _
    $region13: #{feature_classifier.1} parent=1 // pred_fallthru
      _
    %v18 = vld [vmem:[%s0] sm:$0xff]
    %v19 = vld [vmem:[%s0 + $0x8] sm:$0xff]
    %v20 = vld [vmem:[%s1] sm:$0xff]
    %v21 = vld [vmem:[%s1 + $0x8] sm:$0xff]
    %v22 = vld [vmem:[%s1 + $0x10] sm:$0xff]
    %v23 = vld [vmem:[%s1 + $0x18] sm:$0xff]
    %v24 = vld [vmem:[%s1 + $0x20] sm:$0xff]
    %v25 = vld [vmem:[%s1 + $0x28] sm:$0xff]
    %v26 = vld [vmem:[%s1 + $0x30] sm:$0xff]
    %v27 = vld [vmem:[%s1 + $0x38] sm:$0xff]
    %v28 = vld [vmem:[%s1 + $0x40] sm:$0xff]
    %v29 = vld [vmem:[%s1 + $0x48] sm:$0xff]
    %v30 = vld [vmem:[%s1 + $0x50] sm:$0xff]
    %v31 = vld [vmem:[%s1 + $0x58] sm:$0xff]
    %v32 = vld [vmem:[%s1 + $0x60] sm:$0xff]
    %v33 = vld [vmem:[%s1 + $0x68] sm:$0xff]
    %v34 = vld [vmem:[%s1 + $0x70] sm:$0xff]
    %v35 = vld [vmem:[%s1 + $0x78] sm:$0xff]
    %v36 = vld [vmem:[%s1 + $0x80] sm:$0xff]
    %v37 = vld [vmem:[%s1 + $0x88] sm:$0xff]
    %v38 = vld [vmem:[%s1 + $0x90] sm:$0xff]
    %v39 = vld [vmem:[%s1 + $0x98] sm:$0xff]
    %v40 = vld [vmem:[%s1 + $0xa0] sm:$0xff]
    %v41 = vld [vmem:[%s1 + $0xa8] sm:$0xff]
    %v42 = vld [vmem:[%s1 + $0xb0] sm:$0xff]
    %v43 = vld [vmem:[%s1 + $0xb8] sm:$0xff]
    %v44 = vld [vmem:[%s1 + $0xc0] sm:$0xff]
    %v45 = vld [vmem:[%s1 + $0xc8] sm:$0xff]
    %v46 = vld [vmem:[%s1 + $0xd0] sm:$0xff]
    %v47 = vld [vmem:[%s1 + $0xd8] sm:$0xff]
    %v48 = vld [vmem:[%s1 + $0xe0] sm:$0xff]
    %v49 = vld [vmem:[%s1 + $0xe8] sm:$0xff]
    %v50 = vld [vmem:[%s1 + $0xf0] sm:$0xff]
    %v51 = vld [vmem:[%s1 + $0xf8] sm:$0xff]
    %v52 = vld [vmem:[%s2] sm:$0x1]
    %v54 = vlaneseq
    %v55 = vshrl.u32 %v54, 7
    %v56 = vsub.s32 0, %v55
    %v57 = vrot.slane %v52, %v56
    %59 = vmatprep.subr.mxu0 0.0
    %60 = vmatpush1.msra.mxu0 %v20
    %61 = vmatprep.subr.mxu0 0.0
    %62 = vmatpush1.msra.mxu0 %v21
    %63 = vmatprep.subr.mxu0 0.0
    %64 = vmatpush1.msra.mxu0 %v22
    %65 = vmatprep.subr.mxu0 0.0
    %66 = vmatpush1.msra.mxu0 %v23
    %67 = vmatprep.subr.mxu0 0.0
    %68 = vmatpush1.msra.mxu0 %v24
    %69 = vmatprep.subr.mxu0 0.0
    %70 = vmatpush1.msra.mxu0 %v25
    %71 = vmatprep.subr.mxu0 0.0
    %72 = vmatpush1.msra.mxu0 %v26
    %73 = vmatprep.subr.mxu0 0.0
    %74 = vmatpush1.msra.mxu0 %v27
    %75 = vmatprep.subr.mxu0 0.0
    %76 = vmatpush1.msra.mxu0 %v28
    %77 = vmatprep.subr.mxu0 0.0
    %78 = vmatpush1.msra.mxu0 %v29
    %79 = vmatprep.subr.mxu0 0.0
    %80 = vmatpush1.msra.mxu0 %v30
    %81 = vmatprep.subr.mxu0 0.0
    %82 = vmatpush1.msra.mxu0 %v31
    %83 = vmatprep.subr.mxu0 0.0
    %84 = vmatpush1.msra.mxu0 %v32
    %85 = vmatprep.subr.mxu0 0.0
    %86 = vmatpush1.msra.mxu0 %v33
    %87 = vmatprep.subr.mxu0 0.0
    %88 = vmatpush1.msra.mxu0 %v34
    %89 = vmatprep.subr.mxu0 0.0
    %90 = vmatpush1.msra.mxu0 %v35
    %91 = vmatprep.subr.mxu0 0.0
    %92 = vmatpush1.msra.mxu0 %v36
    %93 = vmatprep.subr.mxu0 0.0
    %94 = vmatpush1.msra.mxu0 %v37
    %95 = vmatprep.subr.mxu0 0.0
    %96 = vmatpush1.msra.mxu0 %v38
    %97 = vmatprep.subr.mxu0 0.0
    %98 = vmatpush1.msra.mxu0 %v39
    %99 = vmatprep.subr.mxu0 0.0
    %100 = vmatpush1.msra.mxu0 %v40
    %101 = vmatprep.subr.mxu0 0.0
    %102 = vmatpush1.msra.mxu0 %v41
    %103 = vmatprep.subr.mxu0 0.0
    %104 = vmatpush1.msra.mxu0 %v42
    %105 = vmatprep.subr.mxu0 0.0
    %106 = vmatpush1.msra.mxu0 %v43
    %107 = vmatprep.subr.mxu0 0.0
    %108 = vmatpush1.msra.mxu0 %v44
    %109 = vmatprep.subr.mxu0 0.0
    %110 = vmatpush1.msra.mxu0 %v45
    %111 = vmatprep.subr.mxu0 0.0
    %112 = vmatpush1.msra.mxu0 %v46
    %113 = vmatprep.subr.mxu0 0.0
    %114 = vmatpush1.msra.mxu0 %v47
    %115 = vmatprep.subr.mxu0 0.0
    %116 = vmatpush1.msra.mxu0 %v48
    %117 = vmatprep.subr.mxu0 0.0
    %118 = vmatpush1.msra.mxu0 %v49
    %119 = vmatprep.subr.mxu0 0.0
    %120 = vmatpush1.msra.mxu0 %v50
    %121 = vmatprep.subr.mxu0 0.0
    %122 = vmatpush1.msra.mxu0 %v51
    %123 = vmatprep.mubr.f32.mxu0 %v19
    %124 = vmatmul.mubr.f32.gmra.mrb[0].mxu0 %v18
    %v125 = vpop.f32.mrb[0].mxu0
    %v126 = vadd.f32 %v57, %v125
    %v127 = vpop.f32.mrb[0].mxu0
    %128 = vdwg.mxu0
    %vm129 = vcmask 252928
    %130 = vst.msk [vmem:[#allocation2] sm:$0xff] %vm129, %v126
    %131 = vmax.xlane.f32.xlu0 %v126
    %v132 = vpop.xlane.xlu0 %131
    %v133 = vsub.f32 %v126, %v132
    %v134 = vmul.f32 %v133, 1.442695
    %v135 = vpow.pop %v134
    %136 = vadd.xlane.f32.xlu0 %v135
    %v137 = vpop.xlane.xlu0 %136
    %v138 = vrcp.pop %v137
    %v139 = vmul.f32 %v135, %v138
    %140 = vst.msk [vmem:[#allocation4] sm:$0xff] %vm129, %v139
    // Predicated region
    $region14: #{feature_classifier.1} parent=1 // pred_check
      _
    $region15: #{feature_classifier.1} parent=1 // pred_check_branch
      %142 = sbr.rel (0) target = $region17
    $region16: #{feature_classifier.1} parent=1 // pred_region
      %s144 = ssub.s32 128, 128
      %145 = vsyncadd [#allocation3], %s144
      %s147 = sshll.u32 [#allocation2], 4
      %s148 = int_to_ptr.vmem [resolvable:$true] %s147
      %150 = dma.vmem_to_hbm [thread:$0]  %s148, 128, %s3, [#allocation3]
    $region17: #{feature_classifier.1} parent=1 // pred_fallthru
      _
    // Predicated region
    $region18: #{feature_classifier.1} parent=1 // pred_check
      _
    $region19: #{feature_classifier.1} parent=1 // pred_check_branch
      %152 = sbr.rel (0) target = $region21
    $region20: #{feature_classifier.1} parent=1 // pred_region
      %s154 = ssub.s32 128, 128
      %155 = vsyncadd [#allocation5], %s154
      %s157 = sshll.u32 [#allocation4], 4
      %s158 = int_to_ptr.vmem [resolvable:$true] %s157
      %160 = dma.vmem_to_hbm [thread:$0]  %s158, 128, %s4, [#allocation5]
    $region21: #{feature_classifier.1} parent=1 // pred_fallthru
      _
    // Predicated region
    $region22: #{feature_classifier.1} parent=1 // pred_check
      _
    $region23: #{feature_classifier.1} parent=1 // pred_check_branch
      %162 = sbr.rel (0) target = $region25
    $region24: #{feature_classifier.1} parent=1 // pred_region
      %163 = dma.done [#allocation3], 128
    $region25: #{feature_classifier.1} parent=1 // pred_fallthru
      _
    // Predicated region
    $region26: #{feature_classifier.1} parent=1 // pred_check
      _
    $region27: #{feature_classifier.1} parent=1 // pred_check_branch
      %165 = sbr.rel (0) target = $region29
    $region28: #{feature_classifier.1} parent=1 // pred_region
      %166 = dma.done [#allocation5], 128
    $region29: #{feature_classifier.1} parent=1 // pred_fallthru
      _
    %167 = vsyncpa [#allocation3], 1
    %168 = vsyncpa [#allocation5], 1

</llo_original>
